<compile_context>
chip_gen: v5e
topology: v5e:2x2
jax: 0.10.0
libtpu: 0.0.40
codegen_flags: <defaults>
</compile_context>

<pallas_src>
import functools
import math

import numpy as np
import jax
import jax.numpy as jnp
from jax import lax
from jax.experimental import pallas as pl
from jax.experimental.pallas import tpu as pltpu

# loss hyper-params (match module __init__)
LAMBDA_XYZ = 1.0
LAMBDA_LENGTH = 1.0
LAMBDA_CONF = 1.0
LAMBDA_CLS = 1.0

_R_TILE_MAX = 512                    # max sublane rows per grid step
_VMEM_INPUT_BUDGET = 12 * 1024 * 1024  # double-buffered input bytes budget


def _softplus(z):
    # Numerically stable softplus; BCE(sigmoid(z), t) == softplus(z) - t*z.
    # (Differs from the eps=1e-7 clipped reference only at |z| >~ 16, i.e. at
    #  full sigmoid saturation.)
    return jnp.maximum(z, 0.0) + jnp.log(1.0 + jnp.exp(-jnp.abs(z)))


def _yolo_loss_kernel(pred_ref, tgt_ref, bin_ref, out_ref, *, bs, num_classes):
    j = pl.program_id(1)

    @pl.when(j == 0)
    def _():
        out_ref[...] = jnp.zeros_like(out_ref)

    p = pred_ref[0].astype(jnp.float32)        # (attrs, R, 128)
    t = tgt_ref[0].astype(jnp.float32)         # (5,     R, 128)  f32 targets
    b01 = bin_ref[0].astype(jnp.float32)       # (1+C,   R, 128)  {0,1} targets

    mask = t[0]
    tx, ty, tz, tl = t[1], t[2], t[3], t[4]
    noobj = b01[0]
    tc = b01[1:1 + num_classes]                # (C, R, 128)

    inv_bs = jnp.float32(1.0 / bs)
    w_obj = mask * inv_bs                      # (R,128) weight for MSE terms

    def rsum(v):                               # (R,128) -> (1,128) sublane reduce
        return jnp.sum(v, axis=0, keepdims=True)

    # --- xyz / length MSE (sigmoid only where the raw probability is needed) ---
    dx = jax.nn.sigmoid(p[0]) - tx
    dy = jax.nn.sigmoid(p[1]) - ty
    dz = jax.nn.sigmoid(p[2]) - tz
    dl = p[3] - tl
    sx = rsum(dx * dx * w_obj)
    sy = rsum(dy * dy * w_obj)
    sz = rsum(dz * dz * w_obj)
    sl = rsum(dl * dl * w_obj)

    # --- conf BCE in logits form: mask-weighted + 0.015 * noobj-weighted.
    #     tconf == (mask != 0) exactly (reference sets mask >= 1 with tconf=1).
    zc = p[4]
    tconf = (mask != 0.0).astype(jnp.float32)
    bce_conf = _softplus(zc) - tconf * zc
    w_conf = (mask + 0.015 * noobj) * inv_bs
    sconf = rsum(bce_conf * w_conf)

    # --- cls BCE, gated on exact mask == 1 (matches reference semantics) ---
    zcls = p[5:5 + num_classes]                # (C, R, 128)
    bce_cls = _softplus(zcls) - tc * zcls
    sel_w = jnp.where(mask == 1.0, inv_bs, 0.0)
    scls = rsum(jnp.sum(bce_cls, axis=0) * sel_w)

    # --- single fused accumulator update; rows = [x, y, z, l, conf, cls, 0, 0] ---
    rows = lax.broadcasted_iota(jnp.int32, (8, 128), 0)
    acc = (jnp.where(rows == 0, sx, 0.0) + jnp.where(rows == 1, sy, 0.0)
           + jnp.where(rows == 2, sz, 0.0) + jnp.where(rows == 3, sl, 0.0)
           + jnp.where(rows == 4, sconf, 0.0) + jnp.where(rows == 5, scls, 0.0))
    out_ref[...] += acc[None, :, :]


def yolo_loss_pallas(pred4, tgt4, bin4, *, bs, num_classes, r_tile):
    ba, attrs, r_total, lanes = pred4.shape
    assert lanes == 128 and r_total % r_tile == 0
    n_chunks = r_total // r_tile

    out = pl.pallas_call(
        functools.partial(_yolo_loss_kernel, bs=bs, num_classes=num_classes),
        out_shape=jax.ShapeDtypeStruct((ba, 8, 128), jnp.float32),
        grid_spec=pltpu.PrefetchScalarGridSpec(
            num_scalar_prefetch=0,
            grid=(ba, n_chunks),
            in_specs=[
                pl.BlockSpec((1, attrs, r_tile, 128), lambda i, j: (i, 0, j, 0)),
                pl.BlockSpec((1, 5, r_tile, 128), lambda i, j: (i, 0, j, 0)),
                pl.BlockSpec((1, 1 + num_classes, r_tile, 128),
                             lambda i, j: (i, 0, j, 0)),
            ],
            out_specs=pl.BlockSpec((1, 8, 128), lambda i, j: (i, 0, 0)),
        ),
        compiler_params=pltpu.CompilerParams(
            dimension_semantics=("parallel", "arbitrary"),
            vmem_limit_bytes=32 * 1024 * 1024),
    )(pred4, tgt4, bin4)
    # Reduce per-(b,a) per-lane partials -> [x, y, z, l, conf, cls, 0, 0].
    return jnp.sum(out, axis=(0, 2))


# ----------------------------- host-side glue ------------------------------ #

def get_target_np(targets, scaled_anchors, in_w, in_h, in_d,
                  num_anchors, num_classes, img_size):
    """numpy mirror of YOLOLoss.get_target (data-dependent scatter, host-side)."""
    bs = len(targets)
    shp = (bs, num_anchors, in_d, in_h, in_w)
    mask = np.zeros(shp, np.float32)
    noobj_mask = np.ones(shp, np.float32)
    tx = np.zeros(shp, np.float32)
    ty = np.zeros(shp, np.float32)
    tz = np.zeros(shp, np.float32)
    tl = np.zeros(shp, np.float32)
    tconf = np.zeros(shp, np.float32)
    tcls = np.zeros(shp + (num_classes,), np.float32)

    anchor_index = [0, 1, 2]
    subtract_index = 0
    sa = np.array(scaled_anchors, np.float32)  # (A, 3)

    for b in range(bs):
        for t in range(targets[b].shape[0]):
            gx = targets[b][t, 0] * in_w
            gy = targets[b][t, 1] * in_h
            gz = targets[b][t, 2] * in_d
            gl = targets[b][t, 3] * in_w
            gi, gj, gk = int(gx), int(gy), int(gz)
            gw = gh = gd = 2.0 * gl
            # TODO(synk): bbox_iou is not defined in the provided source; use the
            # standard 3D IoU of zero-centered [gw,gh,gd] box vs anchor shapes.
            inter = (np.minimum(gw, sa[:, 0]) * np.minimum(gh, sa[:, 1]) *
                     np.minimum(gd, sa[:, 2]))
            vol_g = gw * gh * gd
            vol_a = sa[:, 0] * sa[:, 1] * sa[:, 2]
            ious = inter / (vol_g + vol_a - inter + 1e-16)
            best_n = int(np.argmax(ious))
            cur = ious[subtract_index:subtract_index + 3]
            noobj_mask[b, cur > 0.5, gk, gj, gi] = 0
            if best_n not in anchor_index:
                continue
            if gj < in_h and gi < in_w and gk < in_d:
                best_n = best_n - subtract_index
                noobj_mask[b, best_n, gk, gj, gi] = 0
                mask[b, best_n, gk, gj, gi] = (gl / in_w * img_size[0] - 4) ** 2 / 2 + 1
                tx[b, best_n, gk, gj, gi] = gx - gi
                ty[b, best_n, gk, gj, gi] = gy - gj
                tz[b, best_n, gk, gj, gi] = gz - gk
                tl[b, best_n, gk, gj, gi] = math.log(
                    (gw + gh + gd) / 3 / scaled_anchors[best_n + subtract_index][0])
                tconf[b, best_n, gk, gj, gi] = 1
                tcls[b, best_n, gk, gj, gi, int(targets[b][t, 4])] = 1
    return mask, noobj_mask, tx, ty, tz, tl, tconf, tcls


def yolo_loss_forward(x, targets, anchors, num_classes, img_size):
    """Mirror of YOLOLoss.forward; heavy math runs in the Pallas kernel."""
    bs = x.shape[0]
    num_anchors = len(anchors)
    bbox_attrs = 5 + num_classes
    in_d, in_h, in_w = x.shape[2], x.shape[3], x.shape[4]
    stride_d = img_size[2] / in_d
    stride_h = img_size[1] / in_h
    stride_w = img_size[0] / in_w
    scaled_anchors = [(aw / stride_w, ah / stride_h, ad / stride_d)
                      for aw, ah, ad in anchors]

    # host-side target construction (glue)
    mask, noobj, tx, ty, tz, tl, _tconf, tcls = get_target_np(
        targets, scaled_anchors, in_w, in_h, in_d,
        num_anchors, num_classes, img_size)

    ba = bs * num_anchors
    dhw = in_d * in_h * in_w
    r_needed = -(-dhw // 128)                              # ceil(dhw / 128)

    # adaptive tile: biggest multiple-of-8 row count whose double-buffered
    # input slabs (pred + f32 targets + bf16 targets) fit the VMEM budget.
    bytes_per_row = 128 * (4 * bbox_attrs + 4 * 5 + 2 * (1 + num_classes))
    r_cap = max(8, min(_R_TILE_MAX,
                       (_VMEM_INPUT_BUDGET // (2 * bytes_per_row)) // 8 * 8))
    r_tile = min(r_cap, ((r_needed + 7) // 8) * 8)         # multiple of 8 sublanes
    r_total = -(-r_needed // r_tile) * r_tile
    n_pad = r_total * 128

    # prediction: NC(D)HW -> (bs*A, attrs, DHW) is a pure (free) reshape; no
    # device transpose, dtype kept as-is (upcast in-kernel).  Pad flattened
    # spatial dim with zeros only when needed (padded lanes get zero weights).
    pred3 = jnp.reshape(x, (ba, bbox_attrs, dhw))
    if n_pad != dhw:
        pred3 = jnp.pad(pred3, ((0, 0), (0, 0), (0, n_pad - dhw)))
    pred4 = pred3.reshape(ba, bbox_attrs, r_total, 128)

    # fractional-valued targets stay f32: [mask, tx, ty, tz, tl]
    tgt = np.stack([mask, tx, ty, tz, tl], axis=2).reshape(ba, 5, dhw)
    # exactly-{0,1} targets ship as bf16 (lossless, half the HBM bytes):
    # [noobj_mask, tcls_0, ..., tcls_{C-1}]
    tcls_m = np.moveaxis(tcls, 5, 2)                        # (bs, A, C, D, H, W)
    bin_np = np.concatenate([noobj[:, :, None], tcls_m],
                            axis=2).reshape(ba, 1 + num_classes, dhw)
    if n_pad != dhw:
        tgt = np.pad(tgt, ((0, 0), (0, 0), (0, n_pad - dhw)))
        bin_np = np.pad(bin_np, ((0, 0), (0, 0), (0, n_pad - dhw)))
    tgt4 = jnp.asarray(tgt.reshape(ba, 5, r_total, 128), dtype=jnp.float32)
    bin4 = jnp.asarray(bin_np.reshape(ba, 1 + num_classes, r_total, 128),
                       dtype=jnp.bfloat16)

    losses = yolo_loss_pallas(pred4, tgt4, bin4, bs=bs,
                              num_classes=num_classes, r_tile=r_tile)
    loss_x, loss_y, loss_z = losses[0], losses[1], losses[2]
    loss_l, loss_conf, loss_cls = losses[3], losses[4], losses[5]
    loss = (loss_x * LAMBDA_XYZ + loss_y * LAMBDA_XYZ + loss_z * LAMBDA_XYZ +
            loss_l * LAMBDA_LENGTH + loss_conf * LAMBDA_CONF +
            loss_cls * LAMBDA_CLS)
    return (loss, float(loss_x), float(loss_y), float(loss_z),
            float(loss_l), float(loss_conf), float(loss_cls))


if __name__ == "__main__":
    key = jax.random.PRNGKey(0)

    # small, consistent shapes: bs=2, 3 anchors, 2 classes, img_size=(32,32,32)
    bs = 2
    num_classes = 2
    anchors = [(8.0, 8.0, 8.0), (12.0, 12.0, 12.0), (16.0, 16.0, 16.0)]
    img_size = (32, 32, 32)
    in_w = in_h = in_d = img_size[0] // 8          # = 4 (matches feature_length)
    bbox_attrs = 5 + num_classes                   # = 7
    num_anchors = len(anchors)

    # deterministic network output (NC(D)HW): (bs, A*attrs, D, H, W)
    x = jax.random.normal(
        key, (bs, num_anchors * bbox_attrs, in_d, in_h, in_w), dtype=jnp.float32)

    # deterministic ground-truth targets: [cx, cy, cz, length, class] in [0,1)
    # (length 0.125 makes mask exactly 1 -> exercises the cls-loss branch)
    targets = [
        np.array([[0.30, 0.40, 0.50, 0.125, 0.0],
                  [0.70, 0.20, 0.60, 0.200, 1.0]], dtype=np.float32),
        np.array([[0.55, 0.60, 0.30, 0.125, 1.0]], dtype=np.float32),
    ]

    out = yolo_loss_forward(x, targets, anchors, num_classes, img_size)
    jax.block_until_ready(out[0])
    print("KERNEL_OK")
</pallas_src>

<mosaic_0001>
module attributes {stable_mosaic.version = 11 : i64} {
  func.func @_yolo_loss_kernel(%arg0: i32, %arg1: i32, %arg2: memref<1x7x8x128xf32, #tpu.memory_space<vmem>>, %arg3: memref<1x5x8x128xf32, #tpu.memory_space<vmem>>, %arg4: memref<1x3x8x128xbf16, #tpu.memory_space<vmem>>, %arg5: memref<1x8x128xf32, #tpu.memory_space<vmem>>) attributes {dimension_semantics = [#tpu.dimension_semantics<parallel>, #tpu.dimension_semantics<arbitrary>], iteration_bounds = array<i64: 6, 1>, scalar_prefetch = 0 : i64, scratch_operands = 0 : i64, tpu.core_type = #tpu.core_type<tc>, window_params = [{transform_indices = @transform_0, window_bounds = array<i64: 1, 7, 8, 128>}, {transform_indices = @transform_1, window_bounds = array<i64: 1, 5, 8, 128>}, {transform_indices = @transform_2, window_bounds = array<i64: 1, 3, 8, 128>}, {transform_indices = @transform_3, window_bounds = array<i64: 1, 8, 128>}]} {
    %c0_i32 = arith.constant 0 : i32
    %0 = arith.cmpi eq, %arg1, %c0_i32 : i32
    %1 = arith.extui %0 : i1 to i32
    %c0_i32_0 = arith.constant 0 : i32
    %2 = arith.cmpi ne, %1, %c0_i32_0 : i32
    scf.if %2 {
      %cst_47 = arith.constant 0.000000e+00 : f32
      %162 = vector.broadcast %cst_47 : f32 to vector<1x8x128xf32>
      %c0_48 = arith.constant 0 : index
      %c0_49 = arith.constant 0 : index
      %c0_50 = arith.constant 0 : index
      %163 = vector.load %arg5[%c0_48, %c0_49, %c0_50] : memref<1x8x128xf32, #tpu.memory_space<vmem>>, vector<1x8x128xf32>
      tpu.vector_store %arg5[%c0_48, %c0_49, %c0_50], %162 {strides = array<i32>} : memref<1x8x128xf32, #tpu.memory_space<vmem>>, vector<1x8x128xf32>,
    } else {
    }
    %c0 = arith.constant 0 : index
    %c0_1 = arith.constant 0 : index
    %c0_2 = arith.constant 0 : index
    %c0_3 = arith.constant 0 : index
    %3 = vector.load %arg2[%c0, %c0_1, %c0_2, %c0_3] : memref<1x7x8x128xf32, #tpu.memory_space<vmem>>, vector<1x7x8x128xf32>
    %4 = vector.shape_cast %3 : vector<1x7x8x128xf32> to vector<7x8x128xf32>
    %c0_4 = arith.constant 0 : index
    %c0_5 = arith.constant 0 : index
    %c0_6 = arith.constant 0 : index
    %c0_7 = arith.constant 0 : index
    %5 = vector.load %arg3[%c0_4, %c0_5, %c0_6, %c0_7] : memref<1x5x8x128xf32, #tpu.memory_space<vmem>>, vector<1x5x8x128xf32>
    %6 = vector.shape_cast %5 : vector<1x5x8x128xf32> to vector<5x8x128xf32>
    %c0_8 = arith.constant 0 : index
    %c0_9 = arith.constant 0 : index
    %c0_10 = arith.constant 0 : index
    %c0_11 = arith.constant 0 : index
    %7 = vector.load %arg4[%c0_8, %c0_9, %c0_10, %c0_11] : memref<1x3x8x128xbf16, #tpu.memory_space<vmem>>, vector<1x3x8x128xbf16>
    %8 = vector.shape_cast %7 : vector<1x3x8x128xbf16> to vector<3x8x128xbf16>
    %9 = arith.extf %8 : vector<3x8x128xbf16> to vector<3x8x128xf32>
    %10 = vector.extract_strided_slice %6 {offsets = [0, 0, 0], sizes = [1, 8, 128], strides = [1, 1, 1]} : vector<5x8x128xf32> to vector<1x8x128xf32>
    %11 = vector.shape_cast %10 : vector<1x8x128xf32> to vector<8x128xf32>
    %12 = vector.extract_strided_slice %6 {offsets = [1, 0, 0], sizes = [1, 8, 128], strides = [1, 1, 1]} : vector<5x8x128xf32> to vector<1x8x128xf32>
    %13 = vector.shape_cast %12 : vector<1x8x128xf32> to vector<8x128xf32>
    %14 = vector.extract_strided_slice %6 {offsets = [2, 0, 0], sizes = [1, 8, 128], strides = [1, 1, 1]} : vector<5x8x128xf32> to vector<1x8x128xf32>
    %15 = vector.shape_cast %14 : vector<1x8x128xf32> to vector<8x128xf32>
    %16 = vector.extract_strided_slice %6 {offsets = [3, 0, 0], sizes = [1, 8, 128], strides = [1, 1, 1]} : vector<5x8x128xf32> to vector<1x8x128xf32>
    %17 = vector.shape_cast %16 : vector<1x8x128xf32> to vector<8x128xf32>
    %18 = vector.extract_strided_slice %6 {offsets = [4, 0, 0], sizes = [1, 8, 128], strides = [1, 1, 1]} : vector<5x8x128xf32> to vector<1x8x128xf32>
    %19 = vector.shape_cast %18 : vector<1x8x128xf32> to vector<8x128xf32>
    %20 = vector.extract_strided_slice %9 {offsets = [0, 0, 0], sizes = [1, 8, 128], strides = [1, 1, 1]} : vector<3x8x128xf32> to vector<1x8x128xf32>
    %21 = vector.shape_cast %20 : vector<1x8x128xf32> to vector<8x128xf32>
    %22 = vector.extract_strided_slice %9 {offsets = [1, 0, 0], sizes = [2, 8, 128], strides = [1, 1, 1]} : vector<3x8x128xf32> to vector<2x8x128xf32>
    %cst = arith.constant 5.000000e-01 : f32
    %23 = vector.broadcast %cst : f32 to vector<8x128xf32>
    %24 = arith.mulf %11, %23 : vector<8x128xf32>
    %25 = vector.extract_strided_slice %4 {offsets = [0, 0, 0], sizes = [1, 8, 128], strides = [1, 1, 1]} : vector<7x8x128xf32> to vector<1x8x128xf32>
    %26 = vector.shape_cast %25 : vector<1x8x128xf32> to vector<8x128xf32>
    %27 = arith.negf %26 : vector<8x128xf32>
    %28 = math.exp %27 : vector<8x128xf32>
    %cst_12 = arith.constant 1.000000e+00 : f32
    %29 = vector.broadcast %cst_12 : f32 to vector<8x128xf32>
    %30 = arith.addf %29, %28 : vector<8x128xf32>
    %31 = arith.divf %29, %30 : vector<8x128xf32>
    %32 = arith.subf %31, %13 : vector<8x128xf32>
    %33 = vector.extract_strided_slice %4 {offsets = [1, 0, 0], sizes = [1, 8, 128], strides = [1, 1, 1]} : vector<7x8x128xf32> to vector<1x8x128xf32>
    %34 = vector.shape_cast %33 : vector<1x8x128xf32> to vector<8x128xf32>
    %35 = arith.negf %34 : vector<8x128xf32>
    %36 = math.exp %35 : vector<8x128xf32>
    %cst_13 = arith.constant 1.000000e+00 : f32
    %37 = vector.broadcast %cst_13 : f32 to vector<8x128xf32>
    %38 = arith.addf %37, %36 : vector<8x128xf32>
    %39 = arith.divf %37, %38 : vector<8x128xf32>
    %40 = arith.subf %39, %15 : vector<8x128xf32>
    %41 = vector.extract_strided_slice %4 {offsets = [2, 0, 0], sizes = [1, 8, 128], strides = [1, 1, 1]} : vector<7x8x128xf32> to vector<1x8x128xf32>
    %42 = vector.shape_cast %41 : vector<1x8x128xf32> to vector<8x128xf32>
    %43 = arith.negf %42 : vector<8x128xf32>
    %44 = math.exp %43 : vector<8x128xf32>
    %cst_14 = arith.constant 1.000000e+00 : f32
    %45 = vector.broadcast %cst_14 : f32 to vector<8x128xf32>
    %46 = arith.addf %45, %44 : vector<8x128xf32>
    %47 = arith.divf %45, %46 : vector<8x128xf32>
    %48 = arith.subf %47, %17 : vector<8x128xf32>
    %49 = vector.extract_strided_slice %4 {offsets = [3, 0, 0], sizes = [1, 8, 128], strides = [1, 1, 1]} : vector<7x8x128xf32> to vector<1x8x128xf32>
    %50 = vector.shape_cast %49 : vector<1x8x128xf32> to vector<8x128xf32>
    %51 = arith.subf %50, %19 : vector<8x128xf32>
    %52 = arith.mulf %32, %32 : vector<8x128xf32>
    %53 = arith.mulf %52, %24 : vector<8x128xf32>
    %cst_15 = arith.constant dense<0.000000e+00> : vector<128xf32>
    %54 = vector.multi_reduction <add>, %53, %cst_15 [0] : vector<8x128xf32> to vector<128xf32>
    %55 = vector.shape_cast %54 : vector<128xf32> to vector<1x128xf32>
    %56 = arith.mulf %40, %40 : vector<8x128xf32>
    %57 = arith.mulf %56, %24 : vector<8x128xf32>
    %cst_16 = arith.constant dense<0.000000e+00> : vector<128xf32>
    %58 = vector.multi_reduction <add>, %57, %cst_16 [0] : vector<8x128xf32> to vector<128xf32>
    %59 = vector.shape_cast %58 : vector<128xf32> to vector<1x128xf32>
    %60 = arith.mulf %48, %48 : vector<8x128xf32>
    %61 = arith.mulf %60, %24 : vector<8x128xf32>
    %cst_17 = arith.constant dense<0.000000e+00> : vector<128xf32>
    %62 = vector.multi_reduction <add>, %61, %cst_17 [0] : vector<8x128xf32> to vector<128xf32>
    %63 = vector.shape_cast %62 : vector<128xf32> to vector<1x128xf32>
    %64 = arith.mulf %51, %51 : vector<8x128xf32>
    %65 = arith.mulf %64, %24 : vector<8x128xf32>
    %cst_18 = arith.constant dense<0.000000e+00> : vector<128xf32>
    %66 = vector.multi_reduction <add>, %65, %cst_18 [0] : vector<8x128xf32> to vector<128xf32>
    %67 = vector.shape_cast %66 : vector<128xf32> to vector<1x128xf32>
    %68 = vector.extract_strided_slice %4 {offsets = [4, 0, 0], sizes = [1, 8, 128], strides = [1, 1, 1]} : vector<7x8x128xf32> to vector<1x8x128xf32>
    %69 = vector.shape_cast %68 : vector<1x8x128xf32> to vector<8x128xf32>
    %cst_19 = arith.constant 0.000000e+00 : f32
    %70 = vector.broadcast %cst_19 : f32 to vector<8x128xf32>
    %71 = arith.cmpf one, %11, %70 : vector<8x128xf32>
    %72 = arith.extui %71 : vector<8x128xi1> to vector<8x128xi32>
    %73 = arith.sitofp %72 : vector<8x128xi32> to vector<8x128xf32>
    %cst_20 = arith.constant 0.000000e+00 : f32
    %74 = vector.broadcast %cst_20 : f32 to vector<8x128xf32>
    %75 = arith.maximumf %69, %74 : vector<8x128xf32>
    %76 = math.absf %69 : vector<8x128xf32>
    %cst_21 = arith.constant 0.000000e+00 : f32
    %77 = vector.broadcast %cst_21 : f32 to vector<8x128xf32>
    %78 = arith.subf %77, %76 : vector<8x128xf32>
    %79 = math.exp %78 : vector<8x128xf32>
    %cst_22 = arith.constant 1.000000e+00 : f32
    %80 = vector.broadcast %cst_22 : f32 to vector<8x128xf32>
    %81 = arith.addf %80, %79 : vector<8x128xf32>
    %82 = math.log %81 : vector<8x128xf32>
    %83 = arith.addf %75, %82 : vector<8x128xf32>
    %84 = arith.mulf %73, %69 : vector<8x128xf32>
    %85 = arith.subf %83, %84 : vector<8x128xf32>
    %cst_23 = arith.constant 1.500000e-02 : f32
    %86 = vector.broadcast %cst_23 : f32 to vector<8x128xf32>
    %87 = arith.mulf %86, %21 : vector<8x128xf32>
    %88 = arith.addf %11, %87 : vector<8x128xf32>
    %cst_24 = arith.constant 5.000000e-01 : f32
    %89 = vector.broadcast %cst_24 : f32 to vector<8x128xf32>
    %90 = arith.mulf %88, %89 : vector<8x128xf32>
    %91 = arith.mulf %85, %90 : vector<8x128xf32>
    %cst_25 = arith.constant dense<0.000000e+00> : vector<128xf32>
    %92 = vector.multi_reduction <add>, %91, %cst_25 [0] : vector<8x128xf32> to vector<128xf32>
    %93 = vector.shape_cast %92 : vector<128xf32> to vector<1x128xf32>
    %94 = vector.extract_strided_slice %4 {offsets = [5, 0, 0], sizes = [2, 8, 128], strides = [1, 1, 1]} : vector<7x8x128xf32> to vector<2x8x128xf32>
    %cst_26 = arith.constant 0.000000e+00 : f32
    %95 = vector.broadcast %cst_26 : f32 to vector<2x8x128xf32>
    %96 = arith.maximumf %94, %95 : vector<2x8x128xf32>
    %97 = math.absf %94 : vector<2x8x128xf32>
    %cst_27 = arith.constant 0.000000e+00 : f32
    %98 = vector.broadcast %cst_27 : f32 to vector<2x8x128xf32>
    %99 = arith.subf %98, %97 : vector<2x8x128xf32>
    %100 = math.exp %99 : vector<2x8x128xf32>
    %cst_28 = arith.constant 1.000000e+00 : f32
    %101 = vector.broadcast %cst_28 : f32 to vector<2x8x128xf32>
    %102 = arith.addf %101, %100 : vector<2x8x128xf32>
    %103 = math.log %102 : vector<2x8x128xf32>
    %104 = arith.addf %96, %103 : vector<2x8x128xf32>
    %105 = arith.mulf %22, %94 : vector<2x8x128xf32>
    %106 = arith.subf %104, %105 : vector<2x8x128xf32>
    %cst_29 = arith.constant 1.000000e+00 : f32
    %107 = vector.broadcast %cst_29 : f32 to vector<8x128xf32>
    %108 = arith.cmpf oeq, %11, %107 : vector<8x128xf32>
    %cst_30 = arith.constant 5.000000e-01 : f32
    %cst_31 = arith.constant 0.000000e+00 : f32
    %109 = vector.broadcast %cst_30 : f32 to vector<8x128xf32>
    %110 = vector.broadcast %cst_31 : f32 to vector<8x128xf32>
    %111 = arith.select %108, %109, %110 : vector<8x128xi1>, vector<8x128xf32>
    %cst_32 = arith.constant dense<0.000000e+00> : vector<8x128xf32>
    %112 = vector.multi_reduction <add>, %106, %cst_32 [0] : vector<2x8x128xf32> to vector<8x128xf32>
    %113 = arith.mulf %112, %111 : vector<8x128xf32>
    %cst_33 = arith.constant dense<0.000000e+00> : vector<128xf32>
    %114 = vector.multi_reduction <add>, %113, %cst_33 [0] : vector<8x128xf32> to vector<128xf32>
    %115 = vector.shape_cast %114 : vector<128xf32> to vector<1x128xf32>
    %116 = tpu.iota {dimensions = array<i32: 0>} : vector<8x128xi32>
    %c0_i32_34 = arith.constant 0 : i32
    %117 = vector.broadcast %c0_i32_34 : i32 to vector<8x128xi32>
    %118 = arith.cmpi eq, %116, %117 : vector<8x128xi32>
    %cst_35 = arith.constant 0.000000e+00 : f32
    %119 = vector.shape_cast %55 : vector<1x128xf32> to vector<1x128xf32>
    %120 = vector.broadcast %119 : vector<1x128xf32> to vector<8x128xf32>
    %121 = vector.broadcast %cst_35 : f32 to vector<8x128xf32>
    %122 = arith.select %118, %120, %121 : vector<8x128xi1>, vector<8x128xf32>
    %c1_i32 = arith.constant 1 : i32
    %123 = vector.broadcast %c1_i32 : i32 to vector<8x128xi32>
    %124 = arith.cmpi eq, %116, %123 : vector<8x128xi32>
    %cst_36 = arith.constant 0.000000e+00 : f32
    %125 = vector.shape_cast %59 : vector<1x128xf32> to vector<1x128xf32>
    %126 = vector.broadcast %125 : vector<1x128xf32> to vector<8x128xf32>
    %127 = vector.broadcast %cst_36 : f32 to vector<8x128xf32>
    %128 = arith.select %124, %126, %127 : vector<8x128xi1>, vector<8x128xf32>
    %129 = arith.addf %122, %128 : vector<8x128xf32>
    %c2_i32 = arith.constant 2 : i32
    %130 = vector.broadcast %c2_i32 : i32 to vector<8x128xi32>
    %131 = arith.cmpi eq, %116, %130 : vector<8x128xi32>
    %cst_37 = arith.constant 0.000000e+00 : f32
    %132 = vector.shape_cast %63 : vector<1x128xf32> to vector<1x128xf32>
    %133 = vector.broadcast %132 : vector<1x128xf32> to vector<8x128xf32>
    %134 = vector.broadcast %cst_37 : f32 to vector<8x128xf32>
    %135 = arith.select %131, %133, %134 : vector<8x128xi1>, vector<8x128xf32>
    %136 = arith.addf %129, %135 : vector<8x128xf32>
    %c3_i32 = arith.constant 3 : i32
    %137 = vector.broadcast %c3_i32 : i32 to vector<8x128xi32>
    %138 = arith.cmpi eq, %116, %137 : vector<8x128xi32>
    %cst_38 = arith.constant 0.000000e+00 : f32
    %139 = vector.shape_cast %67 : vector<1x128xf32> to vector<1x128xf32>
    %140 = vector.broadcast %139 : vector<1x128xf32> to vector<8x128xf32>
    %141 = vector.broadcast %cst_38 : f32 to vector<8x128xf32>
    %142 = arith.select %138, %140, %141 : vector<8x128xi1>, vector<8x128xf32>
    %143 = arith.addf %136, %142 : vector<8x128xf32>
    %c4_i32 = arith.constant 4 : i32
    %144 = vector.broadcast %c4_i32 : i32 to vector<8x128xi32>
    %145 = arith.cmpi eq, %116, %144 : vector<8x128xi32>
    %cst_39 = arith.constant 0.000000e+00 : f32
    %146 = vector.shape_cast %93 : vector<1x128xf32> to vector<1x128xf32>
    %147 = vector.broadcast %146 : vector<1x128xf32> to vector<8x128xf32>
    %148 = vector.broadcast %cst_39 : f32 to vector<8x128xf32>
    %149 = arith.select %145, %147, %148 : vector<8x128xi1>, vector<8x128xf32>
    %150 = arith.addf %143, %149 : vector<8x128xf32>
    %c5_i32 = arith.constant 5 : i32
    %151 = vector.broadcast %c5_i32 : i32 to vector<8x128xi32>
    %152 = arith.cmpi eq, %116, %151 : vector<8x128xi32>
    %cst_40 = arith.constant 0.000000e+00 : f32
    %153 = vector.shape_cast %115 : vector<1x128xf32> to vector<1x128xf32>
    %154 = vector.broadcast %153 : vector<1x128xf32> to vector<8x128xf32>
    %155 = vector.broadcast %cst_40 : f32 to vector<8x128xf32>
    %156 = arith.select %152, %154, %155 : vector<8x128xi1>, vector<8x128xf32>
    %157 = arith.addf %150, %156 : vector<8x128xf32>
    %c0_41 = arith.constant 0 : index
    %c0_42 = arith.constant 0 : index
    %c0_43 = arith.constant 0 : index
    %158 = vector.load %arg5[%c0_41, %c0_42, %c0_43] : memref<1x8x128xf32, #tpu.memory_space<vmem>>, vector<1x8x128xf32>
    %159 = vector.shape_cast %157 : vector<8x128xf32> to vector<1x8x128xf32>
    %160 = arith.addf %158, %159 : vector<1x8x128xf32>
    %c0_44 = arith.constant 0 : index
    %c0_45 = arith.constant 0 : index
    %c0_46 = arith.constant 0 : index
    %161 = vector.load %arg5[%c0_44, %c0_45, %c0_46] : memref<1x8x128xf32, #tpu.memory_space<vmem>>, vector<1x8x128xf32>
    tpu.vector_store %arg5[%c0_44, %c0_45, %c0_46], %160 {strides = array<i32>} : memref<1x8x128xf32, #tpu.memory_space<vmem>>, vector<1x8x128xf32>,
    return
  }
  func.func @transform_0(%arg0: i32, %arg1: i32) -> (i32, i32, i32, i32) {
    %c0_i32 = arith.constant 0 : i32
    %c0_i32_0 = arith.constant 0 : i32
    %c0_i32_1 = arith.constant 0 : i32
    return %arg0, %c0_i32, %arg1, %c0_i32_0 : i32, i32, i32, i32
  }
  func.func @transform_1(%arg0: i32, %arg1: i32) -> (i32, i32, i32, i32) {
    %c0_i32 = arith.constant 0 : i32
    %c0_i32_0 = arith.constant 0 : i32
    %c0_i32_1 = arith.constant 0 : i32
    return %arg0, %c0_i32, %arg1, %c0_i32_0 : i32, i32, i32, i32
  }
  func.func @transform_2(%arg0: i32, %arg1: i32) -> (i32, i32, i32, i32) {
    %c0_i32 = arith.constant 0 : i32
    %c0_i32_0 = arith.constant 0 : i32
    %c0_i32_1 = arith.constant 0 : i32
    return %arg0, %c0_i32, %arg1, %c0_i32_0 : i32, i32, i32, i32
  }
  func.func @transform_3(%arg0: i32, %arg1: i32) -> (i32, i32, i32) {
    %c0_i32 = arith.constant 0 : i32
    %c0_i32_0 = arith.constant 0 : i32
    %c0_i32_1 = arith.constant 0 : i32
    return %arg0, %c0_i32, %c0_i32_0 : i32, i32, i32
  }
}

</mosaic_0001>

<llo_original>
// kernel: tpu_custom_call.1
$region0: #{tpu_custom_call.1}
  #allocation0 [shape = 'u32[]', space=smem, size = 0x4, offset = 0x4, fixed_abs, tag = 'smem constant byte address 0x4 - core index']
  #allocation1 [shape = 'u32[72,128]{1,0:T(1,128)}', space=vmem, size = 0x9000, scoped, tag = 'internal scratch']
  %s0 = inlined_call_operand.hbm [shape: f32[6,7,8,128], index: 0, kind: input, shape index: {}]
  %s1 = inlined_call_operand.hbm [shape: f32[6,5,8,128], index: 1, kind: input, shape index: {}]
  %s2 = inlined_call_operand.hbm [shape: bf16[6,3,8,128], index: 2, kind: input, shape index: {}]
  %s3 = inlined_call_operand.hbm [shape: f32[6,8,128], index: 3, kind: output, shape index: {}]
  %s4 = sld [smem:[#allocation0]]
  $region61: #{tpu_custom_call.1} parent=0
    _
  %s6 = ssub.s32 1, %s4
  %s7 = scalar_select 0, %s6, %s4
  $region1: #{tpu_custom_call.1} parent=0
    #allocation2 [shape = 'u8[57344]{0}', space=vmem, size = 0xe000, scoped, tag = 'input window, operand 0']
    #allocation3 [shape = 's32[2]{0}', space=sflag, size = 0x8, scoped, tag = 'scoped memory for tpu_custom_call.1']
    #allocation4 [shape = 's32[2]{0}', space=sflag, size = 0x8, scoped, tag = 'scoped memory for tpu_custom_call.1']
    #allocation5 [shape = 'u8[40960]{0}', space=vmem, size = 0xa000, scoped, tag = 'input window, operand 1']
    #allocation6 [shape = 's32[2]{0}', space=sflag, size = 0x8, scoped, tag = 'scoped memory for tpu_custom_call.1']
    #allocation7 [shape = 'u8[12288]{0}', space=vmem, size = 0x3000, scoped, tag = 'input window, operand 2']
    #allocation8 [shape = 'u8[8192]{0}', space=vmem, size = 0x2000, scoped, tag = 'output window, operand 0']
    %8 = vsyncpa [#allocation3], 0
    %s9 = scalar_lea.sflag [#allocation3], 1
    %10 = vsyncpa %s9, 0
    %11 = vsyncpa [#allocation6], 0
    %s12 = scalar_lea.sflag [#allocation6], 1
    %13 = vsyncpa %s12, 0
    %14 = vsyncpa [#allocation4], 0
    %s15 = scalar_lea.sflag [#allocation4], 1
    %16 = vsyncpa %s15, 0
    loop: start=0, step=1, limit=8
    $region2: #{tpu_custom_call.1} parent=1 // loop_pre_header
      _
    $region3: #{tpu_custom_call.1} parent=1 // loop_header
      %s18 = sphi 0, %s22
      %p19 = scmp.ge.s32.totalorder %s18, 8
      %s25 = sphi 0, %s37
      %s26 = sphi 0, %s33
      %s27 = sphi 0, %s25
      %s28 = sphi 0, %s26
      %s29 = sphi 0, %s27
      %s30 = sphi 0, %s28
      %s42 = sphi 0, %s44
      %s45 = sphi 0, %s42
      %s46 = sphi 0, %s45
      %s62 = sphi 0, %s46
      %s70 = sphi 0, %s72
      %s73 = sphi 0, %s70
      %s74 = sphi 0, %s73
      %s90 = sphi 0, %s74
      %s98 = sphi 0, %s100
      %s101 = sphi 0, %s98
      %s102 = sphi 0, %s101
      %s118 = sphi 0, %s102
      %s124 = sphi 0, %s126
      %s127 = sphi 0, %s124
      %s128 = sphi 0, %s127
      %s144 = sphi 0, %s128
    $region4: #{tpu_custom_call.1} parent=1 // loop_header_branch
      %21 = sbr.rel (%p19) target = $region8
    $region5: #{tpu_custom_call.1} parent=1 // loop_body
      %s23 = ssub.s32 %s18, 1
      %s24 = ssub.s32 %s18, 2
      %s31 = sadd.s32 1, %s26
      %p32 = scmp.ge.s32.totalorder %s31, 1
      %s33 = scalar_select %p32, 0, %s31
      %s34 = sadd.s32 1, %s25
      %s35 = scalar_select %p32, %s34, %s25
      %p36 = scmp.ge.s32.totalorder %s35, 6
      %s37 = scalar_select %p36, 0, %s35
      %s38 = ssub.s32 %s25, %s37
      %s39 = ssub.s32 %s26, %s33
      %s40 = sor.u32 %s38, %s39
      %p41 = scmp.eq.s32.totalorder %s40, 0
      %s43 = sadd.s32 %s42, 1
      %s44 = scalar_select %p41, %s42, %s43
      %p47 = pneg %p41
      %p48 = scmp.eq.s32.totalorder %s18, 5
      %p49 = por %p47, %p48
      %p50 = scmp.ne.s32.totalorder %s42, %s45
      %p51 = scmp.eq.s32.totalorder %s18, 0
      %p52 = por %p50, %p51
      %p53 = scmp.ne.s32.totalorder %s42, %s45
      %p54 = scmp.eq.s32.totalorder %s23, 5
      %p55 = por %p53, %p54
      %p56 = scmp.ne.s32.totalorder %s45, %s46
      %p57 = scmp.eq.s32.totalorder %s23, 0
      %p58 = por %p56, %p57
      %p59 = scmp.ne.s32.totalorder %s45, %s46
      %p60 = scmp.eq.s32.totalorder %s24, 5
      %p61 = por %p59, %p60
      %p63 = scmp.ne.s32.totalorder %s46, %s62
      %p64 = scmp.eq.s32.totalorder %s24, 0
      %p65 = por %p63, %p64
      %s66 = ssub.s32 %s25, %s37
      %s67 = ssub.s32 %s26, %s33
      %s68 = sor.u32 %s66, %s67
      %p69 = scmp.eq.s32.totalorder %s68, 0
      %s71 = sadd.s32 %s70, 1
      %s72 = scalar_select %p69, %s70, %s71
      %p75 = pneg %p69
      %p76 = scmp.eq.s32.totalorder %s18, 5
      %p77 = por %p75, %p76
      %p78 = scmp.ne.s32.totalorder %s70, %s73
      %p79 = scmp.eq.s32.totalorder %s18, 0
      %p80 = por %p78, %p79
      %p81 = scmp.ne.s32.totalorder %s70, %s73
      %p82 = scmp.eq.s32.totalorder %s23, 5
      %p83 = por %p81, %p82
      %p84 = scmp.ne.s32.totalorder %s73, %s74
      %p85 = scmp.eq.s32.totalorder %s23, 0
      %p86 = por %p84, %p85
      %p87 = scmp.ne.s32.totalorder %s73, %s74
      %p88 = scmp.eq.s32.totalorder %s24, 5
      %p89 = por %p87, %p88
      %p91 = scmp.ne.s32.totalorder %s74, %s90
      %p92 = scmp.eq.s32.totalorder %s24, 0
      %p93 = por %p91, %p92
      %s94 = ssub.s32 %s25, %s37
      %s95 = ssub.s32 %s26, %s33
      %s96 = sor.u32 %s94, %s95
      %p97 = scmp.eq.s32.totalorder %s96, 0
      %s99 = sadd.s32 %s98, 1
      %s100 = scalar_select %p97, %s98, %s99
      %p103 = pneg %p97
      %p104 = scmp.eq.s32.totalorder %s18, 5
      %p105 = por %p103, %p104
      %p106 = scmp.ne.s32.totalorder %s98, %s101
      %p107 = scmp.eq.s32.totalorder %s18, 0
      %p108 = por %p106, %p107
      %p109 = scmp.ne.s32.totalorder %s98, %s101
      %p110 = scmp.eq.s32.totalorder %s23, 5
      %p111 = por %p109, %p110
      %p112 = scmp.ne.s32.totalorder %s101, %s102
      %p113 = scmp.eq.s32.totalorder %s23, 0
      %p114 = por %p112, %p113
      %p115 = scmp.ne.s32.totalorder %s101, %s102
      %p116 = scmp.eq.s32.totalorder %s24, 5
      %p117 = por %p115, %p116
      %p119 = scmp.ne.s32.totalorder %s102, %s118
      %p120 = scmp.eq.s32.totalorder %s24, 0
      %p121 = por %p119, %p120
      %s122 = ssub.s32 %s25, %s37
      %p123 = scmp.eq.s32.totalorder %s122, 0
      %s125 = sadd.s32 %s124, 1
      %s126 = scalar_select %p123, %s124, %s125
      %p129 = pneg %p123
      %p130 = scmp.eq.s32.totalorder %s18, 5
      %p131 = por %p129, %p130
      %p132 = scmp.ne.s32.totalorder %s124, %s127
      %p133 = scmp.eq.s32.totalorder %s18, 0
      %p134 = por %p132, %p133
      %p135 = scmp.ne.s32.totalorder %s124, %s127
      %p136 = scmp.eq.s32.totalorder %s23, 5
      %p137 = por %p135, %p136
      %p138 = scmp.ne.s32.totalorder %s127, %s128
      %p139 = scmp.eq.s32.totalorder %s23, 0
      %p140 = por %p138, %p139
      %p141 = scmp.ne.s32.totalorder %s127, %s128
      %p142 = scmp.eq.s32.totalorder %s24, 5
      %p143 = por %p141, %p142
      %p145 = scmp.ne.s32.totalorder %s128, %s144
      %p146 = scmp.eq.s32.totalorder %s24, 0
      %p147 = por %p145, %p146
      %p148 = scmp.le.s32.totalorder 1, %s18
      %p149 = scmp.lt.s32.totalorder %s18, 7
      %p150 = pnand %p148, %p149
      %p151 = pneg %p150
      // Predicated region
      $region9: #{tpu_custom_call.1} parent=5 // pred_check
        _
      $region10: #{tpu_custom_call.1} parent=5 // pred_check_branch
        %153 = sbr.rel (%p150) target = $region12
      $region11: #{tpu_custom_call.1} parent=5 // pred_region
        %s154 = ssub.s32 %s18, 1
      $region12: #{tpu_custom_call.1} parent=5 // pred_fallthru
        _
      %p155 = scmp.lt.s32.totalorder %s18, 6
      // Predicated region
      $region13: #{tpu_custom_call.1} parent=5 // pred_check
        %p156 = pneg %p155
      $region14: #{tpu_custom_call.1} parent=5 // pred_check_branch
        %158 = sbr.rel (%p156) target = $region16
      $region15: #{tpu_custom_call.1} parent=5 // pred_region
        // Predicated region
        $region17: #{tpu_custom_call.1} parent=15 // pred_check
          %p159 = pneg %p52
        $region18: #{tpu_custom_call.1} parent=15 // pred_check_branch
          %161 = sbr.rel (%p159) target = $region20
        $region19: #{tpu_custom_call.1} parent=15 // pred_region
          %s162 = sand.u32 %s42, 1
          %s163 = scalar_lea.sflag [#allocation3], %s162
          %s164 = sand.u32 %s42, 1
          %s165 = smul.addr %s164, 56
          %s166 = scalar_lea.vmem [#allocation2], %s165
          %168 = vsyncadd %s163, 0
          %s169 = smul.addr %s25, 7
          %s170 = sadd.s32 %s26, %s169
          %s171 = smul.addr %s170, 8
          %s172 = scalar_lea.hbm %s0, %s171
          %s173 = sshll.u32 %s172, 4
          %s174 = int_to_ptr.hbm [resolvable:$true] %s173
          %s175 = sshll.u32 %s166, 4
          %s176 = int_to_ptr.vmem [resolvable:$true] %s175
          %181 = dma.hbm_to_vmem [thread:$0]  %s174, 896, %s176, %s163, 128, 128, 8
        $region20: #{tpu_custom_call.1} parent=15 // pred_fallthru
          _
        // Predicated region
        $region21: #{tpu_custom_call.1} parent=15 // pred_check
          %p182 = pneg %p80
        $region22: #{tpu_custom_call.1} parent=15 // pred_check_branch
          %184 = sbr.rel (%p182) target = $region24
        $region23: #{tpu_custom_call.1} parent=15 // pred_region
          %s185 = sand.u32 %s18, 1
          %s186 = scalar_lea.sflag [#allocation6], %s185
          %s187 = sand.u32 %s70, 1
          %s188 = smul.addr %s187, 40
          %s189 = scalar_lea.vmem [#allocation5], %s188
          %191 = vsyncadd %s186, 0
          %s192 = smul.addr %s25, 5
          %s193 = sadd.s32 %s26, %s192
          %s194 = smul.addr %s193, 8
          %s195 = scalar_lea.hbm %s1, %s194
          %s196 = sshll.u32 %s195, 4
          %s197 = int_to_ptr.hbm [resolvable:$true] %s196
          %s198 = sshll.u32 %s189, 4
          %s199 = int_to_ptr.vmem [resolvable:$true] %s198
          %204 = dma.hbm_to_vmem [thread:$0]  %s197, 640, %s199, %s186, 128, 128, 8
        $region24: #{tpu_custom_call.1} parent=15 // pred_fallthru
          _
        // Predicated region
        $region25: #{tpu_custom_call.1} parent=15 // pred_check
          %p205 = pneg %p108
        $region26: #{tpu_custom_call.1} parent=15 // pred_check_branch
          %207 = sbr.rel (%p205) target = $region28
        $region27: #{tpu_custom_call.1} parent=15 // pred_region
          %s208 = sand.u32 %s18, 1
          %s209 = scalar_lea.sflag [#allocation6], %s208
          %s210 = sand.u32 %s98, 1
          %s211 = smul.addr %s210, 12
          %s212 = scalar_lea.vmem [#allocation7], %s211
          %214 = vsyncadd %s209, 0
          %s215 = smul.addr %s25, 3
          %s216 = sadd.s32 %s26, %s215
          %s217 = smul.addr %s216, 4
          %s218 = scalar_lea.hbm %s2, %s217
          %s219 = sshll.u32 %s218, 4
          %s220 = int_to_ptr.hbm [resolvable:$true] %s219
          %s221 = sshll.u32 %s212, 4
          %s222 = int_to_ptr.vmem [resolvable:$true] %s221
          %227 = dma.hbm_to_vmem [thread:$0]  %s220, 192, %s222, %s209, 64, 64, 4
        $region28: #{tpu_custom_call.1} parent=15 // pred_fallthru
          _
      $region16: #{tpu_custom_call.1} parent=5 // pred_fallthru
        _
      %p228 = scmp.le.s32.totalorder 1, %s18
      %p229 = scmp.lt.s32.totalorder %s18, 7
      %p230 = pnand %p228, %p229
      %p231 = pneg %p230
      // Predicated region
      $region29: #{tpu_custom_call.1} parent=5 // pred_check
        _
      $region30: #{tpu_custom_call.1} parent=5 // pred_check_branch
        %233 = sbr.rel (%p230) target = $region32
      $region31: #{tpu_custom_call.1} parent=5 // pred_region
        %s234 = ssub.s32 %s18, 1
        %s235 = sand.u32 %s45, 1
        %s236 = scalar_lea.sflag [#allocation3], %s235
        %s237 = sand.u32 %s45, 1
        %s238 = smul.addr %s237, 56
        %s239 = scalar_lea.vmem [#allocation2], %s238
        // Predicated region
        $region33: #{tpu_custom_call.1} parent=31 // pred_check
          %p240 = pneg %p58
        $region34: #{tpu_custom_call.1} parent=31 // pred_check_branch
          %242 = sbr.rel (%p240) target = $region36
        $region35: #{tpu_custom_call.1} parent=31 // pred_region
          %244 = dma.done %s236, 896
        $region36: #{tpu_custom_call.1} parent=31 // pred_fallthru
          _
        %s245 = sand.u32 %s23, 1
        %s246 = scalar_lea.sflag [#allocation6], %s245
        %s247 = sand.u32 %s73, 1
        %s248 = smul.addr %s247, 40
        %s249 = scalar_lea.vmem [#allocation5], %s248
        // Predicated region
        $region37: #{tpu_custom_call.1} parent=31 // pred_check
          %p250 = pneg %p86
        $region38: #{tpu_custom_call.1} parent=31 // pred_check_branch
          %252 = sbr.rel (%p250) target = $region40
        $region39: #{tpu_custom_call.1} parent=31 // pred_region
          %254 = dma.done %s246, 640
        $region40: #{tpu_custom_call.1} parent=31 // pred_fallthru
          _
        %s255 = sand.u32 %s23, 1
        %s256 = scalar_lea.sflag [#allocation6], %s255
        %s257 = sand.u32 %s101, 1
        %s258 = smul.addr %s257, 12
        %s259 = scalar_lea.vmem [#allocation7], %s258
        // Predicated region
        $region41: #{tpu_custom_call.1} parent=31 // pred_check
          %p260 = pneg %p114
        $region42: #{tpu_custom_call.1} parent=31 // pred_check_branch
          %262 = sbr.rel (%p260) target = $region44
        $region43: #{tpu_custom_call.1} parent=31 // pred_region
          %264 = dma.done %s256, 192
        $region44: #{tpu_custom_call.1} parent=31 // pred_fallthru
          _
        %s265 = sand.u32 %s45, 1
        %s266 = scalar_lea.sflag [#allocation3], %s265
        %s267 = sand.u32 %s45, 1
        %s268 = smul.addr %s267, 56
        %s269 = scalar_lea.vmem [#allocation2], %s268
        %p270 = pneg %p58
        %p271 = pneg %p55
        %s272 = sand.u32 %s23, 1
        %s273 = scalar_lea.sflag [#allocation6], %s272
        %s274 = sand.u32 %s73, 1
        %s275 = smul.addr %s274, 40
        %s276 = scalar_lea.vmem [#allocation5], %s275
        %p277 = pneg %p86
        %p278 = pneg %p83
        %s279 = sand.u32 %s23, 1
        %s280 = scalar_lea.sflag [#allocation6], %s279
        %s281 = sand.u32 %s101, 1
        %s282 = smul.addr %s281, 12
        %s283 = scalar_lea.vmem [#allocation7], %s282
        %p284 = pneg %p114
        %p285 = pneg %p111
        %p286 = pneg %p140
        %p287 = pneg %p137
        %s288 = sand.u32 %s127, 1
        %s289 = scalar_lea.sflag [#allocation4], %s288
        %s290 = sand.u32 %s127, 1
        %s291 = smul.addr %s290, 8
        %s292 = scalar_lea.vmem [#allocation8], %s291
        %p293 = scmp.eq.s32.totalorder %s28, 0
        // Predicated region
        $region45: #{tpu_custom_call.1} parent=31 // pred_check
          %p294 = pneg %p293
        $region46: #{tpu_custom_call.1} parent=31 // pred_check_branch
          %296 = sbr.rel (%p294) target = $region48
        $region47: #{tpu_custom_call.1} parent=31 // pred_region
          %297 = vst [vmem:[%s292] sm:$0xff] 0.0
        $region48: #{tpu_custom_call.1} parent=31 // pred_fallthru
          _
        %v298 = vld [vmem:[%s239] sm:$0xff]
        %v299 = vld [vmem:[%s239 + $0x8] sm:$0xff]
        %v300 = vld [vmem:[%s239 + $0x10] sm:$0xff]
        %v301 = vld [vmem:[%s239 + $0x18] sm:$0xff]
        %v302 = vld [vmem:[%s239 + $0x20] sm:$0xff]
        %v303 = vld [vmem:[%s239 + $0x28] sm:$0xff]
        %v304 = vld [vmem:[%s239 + $0x30] sm:$0xff]
        %v305 = vld [vmem:[%s249] sm:$0xff]
        %v306 = vld [vmem:[%s249 + $0x8] sm:$0xff]
        %v307 = vld [vmem:[%s249 + $0x10] sm:$0xff]
        %v308 = vld [vmem:[%s249 + $0x18] sm:$0xff]
        %v309 = vld [vmem:[%s249 + $0x20] sm:$0xff]
        %v310 = vld [vmem:[%s259] sm:$0xf]
        %v311 = vld [vmem:[%s259 + $0x4] sm:$0xf]
        %v312 = vld [vmem:[%s259 + $0x8] sm:$0xf]
        %v313 = vunpack.c.l.bf16 %v310
        %v314 = vunpack.c.l.bf16 %v311
        %v315 = vunpack.c.l.bf16 %v312
        %v316 = vmul.f32 %v305, 0.5
        %v317 = vxor.u32 %v298, 2147483648
        %v318 = vmul.f32 %v317, 1.442695
        %v319 = vpow.pop %v318
        %v320 = vadd.f32 %v319, 1.0
        %v321 = vrcp.pop %v320
        %v322 = vmul.f32 %v320, %v321
        %v323 = vsub.f32 1.0, %v322
        %v324 = vmul.f32 %v321, %v323
        %v325 = vadd.f32 %v321, %v324
        %vm326 = vweird.f32 %v320
        %vm327 = vweird.f32 %v321
        %vm328 = vmor %vm326, %vm327
        %v329 = vsel %vm328, %v321, %v325
        %v330 = vand.u32 2147483647, %v320
        %vm331 = vcmp.eq.f32.partialorder %v330, 8.507059e+37
        %v332 = vand.u32 %v320, 2147483648
        %v333 = vor.u32 1.1754944e-38, %v332
        %v334 = vsel %vm331, %v333, %v329
        %v335 = vmul.f32 1.0, %v334
        %v336 = vsub.f32 %v335, %v306
        %v337 = vxor.u32 %v299, 2147483648
        %v338 = vmul.f32 %v337, 1.442695
        %v339 = vpow.pop %v338
        %v340 = vadd.f32 %v339, 1.0
        %v341 = vrcp.pop %v340
        %v342 = vmul.f32 %v340, %v341
        %v343 = vsub.f32 1.0, %v342
        %v344 = vmul.f32 %v341, %v343
        %v345 = vadd.f32 %v341, %v344
        %vm346 = vweird.f32 %v340
        %vm347 = vweird.f32 %v341
        %vm348 = vmor %vm346, %vm347
        %v349 = vsel %vm348, %v341, %v345
        %v350 = vand.u32 2147483647, %v340
        %vm351 = vcmp.eq.f32.partialorder %v350, 8.507059e+37
        %v352 = vand.u32 %v340, 2147483648
        %v353 = vor.u32 1.1754944e-38, %v352
        %v354 = vsel %vm351, %v353, %v349
        %v355 = vmul.f32 1.0, %v354
        %v356 = vsub.f32 %v355, %v307
        %v357 = vxor.u32 %v300, 2147483648
        %v358 = vmul.f32 %v357, 1.442695
        %v359 = vpow.pop %v358
        %v360 = vadd.f32 %v359, 1.0
        %v361 = vrcp.pop %v360
        %v362 = vmul.f32 %v360, %v361
        %v363 = vsub.f32 1.0, %v362
        %v364 = vmul.f32 %v361, %v363
        %v365 = vadd.f32 %v361, %v364
        %vm366 = vweird.f32 %v360
        %vm367 = vweird.f32 %v361
        %vm368 = vmor %vm366, %vm367
        %v369 = vsel %vm368, %v361, %v365
        %v370 = vand.u32 2147483647, %v360
        %vm371 = vcmp.eq.f32.partialorder %v370, 8.507059e+37
        %v372 = vand.u32 %v360, 2147483648
        %v373 = vor.u32 1.1754944e-38, %v372
        %v374 = vsel %vm371, %v373, %v369
        %v375 = vmul.f32 1.0, %v374
        %v376 = vsub.f32 %v375, %v308
        %v377 = vsub.f32 %v301, %v309
        %v378 = vmul.f32 %v336, %v336
        %v379 = vmul.f32 %v378, %v316
        %v380 = vrot.slane %v379, 4
        %v381 = vadd.f32 %v379, %v380
        %v382 = vrot.slane %v381, 2
        %v383 = vadd.f32 %v381, %v382
        %v384 = vrot.slane %v383, 1
        %v385 = vadd.f32 %v383, %v384
        %v386 = vmul.f32 %v356, %v356
        %v387 = vmul.f32 %v386, %v316
        %v388 = vrot.slane %v387, 4
        %v389 = vadd.f32 %v387, %v388
        %v390 = vrot.slane %v389, 2
        %v391 = vadd.f32 %v389, %v390
        %v392 = vrot.slane %v391, 1
        %v393 = vadd.f32 %v391, %v392
        %v394 = vmul.f32 %v376, %v376
        %v395 = vmul.f32 %v394, %v316
        %v396 = vrot.slane %v395, 4
        %v397 = vadd.f32 %v395, %v396
        %v398 = vrot.slane %v397, 2
        %v399 = vadd.f32 %v397, %v398
        %v400 = vrot.slane %v399, 1
        %v401 = vadd.f32 %v399, %v400
        %v402 = vmul.f32 %v377, %v377
        %v403 = vmul.f32 %v402, %v316
        %v404 = vrot.slane %v403, 4
        %v405 = vadd.f32 %v403, %v404
        %v406 = vrot.slane %v405, 2
        %v407 = vadd.f32 %v405, %v406
        %v408 = vrot.slane %v407, 1
        %v409 = vadd.f32 %v407, %v408
        %vm410 = vcmp.ne.f32.partialorder %v305, 0.0
        %v411 = vsel %vm410, 1, 0
        %v412 = vcvt.s32.f32 %v411
        %v413 = vmax.f32 %v302, 0.0
        %v414 = vand.u32 2147483647, %v302
        %v415 = vsub.f32 0.0, %v414
        %v416 = vmul.f32 %v415, 1.442695
        %v417 = vpow.pop %v416
        %v418 = vadd.f32 %v417, 1.0
        %v419 = vlog2.pop %v418
        %v420 = vmul.f32 %v419, 0.6931472
        %v421 = vadd.f32 %v413, %v420
        %v422 = vmul.f32 %v412, %v302
        %v423 = vsub.f32 %v421, %v422
        %v424 = vmul.f32 %v313, 0.015
        %v425 = vadd.f32 %v305, %v424
        %v426 = vmul.f32 %v425, 0.5
        %v427 = vmul.f32 %v423, %v426
        %v428 = vrot.slane %v427, 4
        %v429 = vadd.f32 %v427, %v428
        %v430 = vrot.slane %v429, 2
        %v431 = vadd.f32 %v429, %v430
        %v432 = vrot.slane %v431, 1
        %v433 = vadd.f32 %v431, %v432
        %v434 = vmax.f32 %v303, 0.0
        %v435 = vmax.f32 %v304, 0.0
        %v436 = vand.u32 2147483647, %v303
        %v437 = vand.u32 2147483647, %v304
        %v438 = vsub.f32 0.0, %v436
        %v439 = vsub.f32 0.0, %v437
        %v440 = vmul.f32 %v438, 1.442695
        %v441 = vpow.pop %v440
        %v442 = vmul.f32 %v439, 1.442695
        %v443 = vpow.pop %v442
        %v444 = vadd.f32 %v441, 1.0
        %v445 = vadd.f32 %v443, 1.0
        %v446 = vlog2.pop %v444
        %v447 = vmul.f32 %v446, 0.6931472
        %v448 = vlog2.pop %v445
        %v449 = vmul.f32 %v448, 0.6931472
        %v450 = vadd.f32 %v434, %v447
        %v451 = vadd.f32 %v435, %v449
        %v452 = vmul.f32 %v314, %v303
        %v453 = vmul.f32 %v315, %v304
        %v454 = vsub.f32 %v450, %v452
        %v455 = vsub.f32 %v451, %v453
        %vm456 = vcmp.eq.f32.partialorder %v305, 1.0
        %v457 = vsel %vm456, 0.5, 0.0
        %v458 = vadd.f32 %v454, %v455
        %v459 = vmul.f32 %v458, %v457
        %v460 = vrot.slane %v459, 4
        %v461 = vadd.f32 %v459, %v460
        %v462 = vrot.slane %v461, 2
        %v463 = vadd.f32 %v461, %v462
        %v464 = vrot.slane %v463, 1
        %v465 = vadd.f32 %v463, %v464
        %v466 = vlaneseq
        %v467 = vshrl.u32 %v466, 7
        %vm468 = vcmp.eq.s32.totalorder %v467, 0
        %v469 = vsel %vm468, %v385, 0.0
        %vm470 = vcmp.eq.s32.totalorder %v467, 1
        %v471 = vsel %vm470, %v393, 0.0
        %v472 = vadd.f32 %v469, %v471
        %vm473 = vcmp.eq.s32.totalorder %v467, 2
        %v474 = vsel %vm473, %v401, 0.0
        %v475 = vadd.f32 %v472, %v474
        %vm476 = vcmp.eq.s32.totalorder %v467, 3
        %v477 = vsel %vm476, %v409, 0.0
        %v478 = vadd.f32 %v475, %v477
        %vm479 = vcmp.eq.s32.totalorder %v467, 4
        %v480 = vsel %vm479, %v433, 0.0
        %v481 = vadd.f32 %v478, %v480
        %vm482 = vcmp.eq.s32.totalorder %v467, 5
        %v483 = vsel %vm482, %v465, 0.0
        %v484 = vadd.f32 %v481, %v483
        %v485 = vld [vmem:[%s292] sm:$0xff]
        %v486 = vadd.f32 %v485, %v484
        %487 = vst [vmem:[%s292] sm:$0xff] %v486
        %s488 = sand.u32 %s127, 1
        %s489 = scalar_lea.sflag [#allocation4], %s488
        %s490 = sand.u32 %s127, 1
        %s491 = smul.addr %s490, 8
        %s492 = scalar_lea.vmem [#allocation8], %s491
        // Predicated region
        $region49: #{tpu_custom_call.1} parent=31 // pred_check
          %p493 = pneg %p137
        $region50: #{tpu_custom_call.1} parent=31 // pred_check_branch
          %495 = sbr.rel (%p493) target = $region52
        $region51: #{tpu_custom_call.1} parent=31 // pred_region
          %497 = vsyncadd %s489, 0
          %s498 = smul.addr %s27, 8
          %s499 = scalar_lea.hbm %s3, %s498
          %s501 = sshll.u32 %s492, 4
          %s502 = int_to_ptr.vmem [resolvable:$true] %s501
          %s503 = sshll.u32 %s499, 4
          %s504 = int_to_ptr.hbm [resolvable:$true] %s503
          %506 = dma.vmem_to_hbm [thread:$0]  %s502, 128, %s504, %s489
        $region52: #{tpu_custom_call.1} parent=31 // pred_fallthru
          _
      $region32: #{tpu_custom_call.1} parent=5 // pred_fallthru
        _
      %p507 = scmp.le.s32.totalorder 2, %s18
      // Predicated region
      $region53: #{tpu_custom_call.1} parent=5 // pred_check
        %p508 = pneg %p507
      $region54: #{tpu_custom_call.1} parent=5 // pred_check_branch
        %510 = sbr.rel (%p508) target = $region56
      $region55: #{tpu_custom_call.1} parent=5 // pred_region
        %s511 = ssub.s32 %s18, 2
        // Predicated region
        $region57: #{tpu_custom_call.1} parent=55 // pred_check
          %p512 = pneg %p143
        $region58: #{tpu_custom_call.1} parent=55 // pred_check_branch
          %514 = sbr.rel (%p512) target = $region60
        $region59: #{tpu_custom_call.1} parent=55 // pred_region
          %s515 = sand.u32 %s128, 1
          %s516 = scalar_lea.sflag [#allocation4], %s515
          %s517 = sand.u32 %s128, 1
          %s518 = smul.addr %s517, 8
          %s519 = scalar_lea.vmem [#allocation8], %s518
          %521 = dma.done %s516, 128
        $region60: #{tpu_custom_call.1} parent=55 // pred_fallthru
          _
      $region56: #{tpu_custom_call.1} parent=5 // pred_fallthru
        _
    $region6: #{tpu_custom_call.1} parent=1 // loop_footer
      %s22 = sadd.s32 1, %s18
    $region7: #{tpu_custom_call.1} parent=1 // loop_footer_branch
      %17 = sbr.rel target = $region3
    $region8: #{tpu_custom_call.1} parent=1 // loop_exit
      _
    %522 = vsyncpa [#allocation3], 1
    %s523 = scalar_lea.sflag [#allocation3], 1
    %524 = vsyncpa %s523, 1
    %525 = vsyncpa [#allocation6], 1
    %s526 = scalar_lea.sflag [#allocation6], 1
    %527 = vsyncpa %s526, 1
    %528 = vsyncpa [#allocation4], 1
    %s529 = scalar_lea.sflag [#allocation4], 1
    %530 = vsyncpa %s529, 1

</llo_original>
